<compile_context>
chip_gen: v5e
topology: v5e:2x2
jax: 0.10.0
libtpu: 0.0.40
codegen_flags: <defaults>
</compile_context>

<pallas_src>
import functools

import jax
import jax.numpy as jnp
from jax import lax
from jax.experimental import pallas as pl
from jax.experimental.pallas import tpu as pltpu


def _channel_attention_kernel(x_ref, w1_ref, w2_ref, out_ref, *, hw_true, hw_pad):
    # x_ref  : (TB, C, HW_pad)  TB batch elements
    # w1_ref : (Cr, C)          fc1 weight (1x1 conv weight squeezed)
    # w2_ref : (C, Cr)          fc2 weight (1x1 conv weight squeezed)
    x = x_ref[...].astype(jnp.float32)                           # (TB, C, HW_pad)
    tb = x.shape[0]

    # --- Pooling over the spatial (lane) axis, accumulated in f32 -------------
    avg = jnp.sum(x, axis=-1) * (1.0 / hw_true)                  # (TB, C)
    if hw_pad != hw_true:
        lane = lax.broadcasted_iota(jnp.int32, (1, 1, hw_pad), 2)
        x_for_max = jnp.where(lane < hw_true, x, -jnp.inf)
    else:
        x_for_max = x
    mx = jnp.max(x_for_max, axis=-1)                             # (TB, C)

    # --- One MLP pass over both pooled vectors: (2*TB, C) ---------------------
    p = jnp.concatenate([avg, mx], axis=0)                       # (2*TB, C)
    w1 = w1_ref[...].astype(jnp.float32)                         # (Cr, C)
    w2 = w2_ref[...].astype(jnp.float32)                         # (C, Cr)
    h = lax.dot_general(p, w1, (((1,), (1,)), ((), ())),
                        preferred_element_type=jnp.float32)      # (2*TB, Cr)
    h = jnp.maximum(h, 0.0)                                      # ReLU
    o = lax.dot_general(h, w2, (((1,), (1,)), ((), ())),
                        preferred_element_type=jnp.float32)      # (2*TB, C)

    y = jax.nn.sigmoid(o[:tb] + o[tb:])                          # (TB, C)

    # --- Epilogue: out = x * y + x == x * (y + 1); single VALU multiply -------
    scale = (y + 1.0)[:, :, None]                                # (TB, C, 1)
    out_ref[...] = (x * scale).astype(out_ref.dtype)


def channel_attention(x, w1, w2, *, block_bytes_budget=4 * 1024 * 1024):
    """x: (B, C, H, W) NCHW; w1: (C//r, C); w2: (C, C//r)."""
    B, C, H, W = x.shape
    HW = H * W
    HW_pad = ((HW + 127) // 128) * 128

    x_flat = x.reshape(B, C, HW)
    if HW_pad != HW:
        x_flat = jnp.pad(x_flat, ((0, 0), (0, 0), (0, HW_pad - HW)))

    # Batch-block size: largest divisor of B whose input block fits the budget
    # (keeps 2x(in block) + 2x(out block) well under v7x's 64 MiB VMEM per TC).
    itemsize = jnp.dtype(x.dtype).itemsize
    per_batch_bytes = C * HW_pad * itemsize
    tb = 1
    for cand in range(1, B + 1):
        if B % cand == 0 and cand * per_batch_bytes <= block_bytes_budget:
            tb = cand

    kernel = functools.partial(_channel_attention_kernel,
                               hw_true=HW, hw_pad=HW_pad)

    out = pl.pallas_call(
        kernel,
        out_shape=jax.ShapeDtypeStruct((B, C, HW_pad), x.dtype),
        grid_spec=pltpu.PrefetchScalarGridSpec(
            num_scalar_prefetch=0,
            grid=(B // tb,),
            in_specs=[
                pl.BlockSpec((tb, C, HW_pad), lambda b: (b, 0, 0)),
                pl.BlockSpec(w1.shape, lambda b: (0, 0)),
                pl.BlockSpec(w2.shape, lambda b: (0, 0)),
            ],
            out_specs=pl.BlockSpec((tb, C, HW_pad), lambda b: (b, 0, 0)),
        ),
        compiler_params=pltpu.CompilerParams(
            dimension_semantics=("parallel",),
            vmem_limit_bytes=32 * 1024 * 1024,
        ),
    )(x_flat, w1, w2)

    if HW_pad != HW:
        out = out[:, :, :HW]
    return out.reshape(B, C, H, W)


def channel_attention_ref(x, w1, w2):
    """Pure-JAX reference matching the PyTorch forward."""
    xf = x.astype(jnp.float32)
    avg = jnp.mean(xf, axis=(2, 3))                      # (B, C)
    mx = jnp.max(xf, axis=(2, 3))                        # (B, C)

    def mlp(p):                                          # p: (B, C)
        h = jnp.maximum(p @ w1.T, 0.0)                   # (B, C//r)
        return h @ w2.T                                  # (B, C)

    y = jax.nn.sigmoid(mlp(avg) + mlp(mx))[:, :, None, None]
    return (y * xf + xf).astype(x.dtype)


if __name__ == "__main__":
    key = jax.random.PRNGKey(0)
    B, C, H, W = 2, 64, 16, 16
    ratio = 16
    Cr = C // ratio

    kx, k1, k2 = jax.random.split(key, 3)
    x = jax.random.normal(kx, (B, C, H, W), dtype=jnp.float32)
    # Deterministic synthetic weights (PyTorch conv weight (out,in,1,1) squeezed)
    w1 = jax.random.normal(k1, (Cr, C), dtype=jnp.float32) * (1.0 / jnp.sqrt(C))
    w2 = jax.random.normal(k2, (C, Cr), dtype=jnp.float32) * (1.0 / jnp.sqrt(Cr))

    out = channel_attention(x, w1, w2)
    out = jax.block_until_ready(out)

    ref = channel_attention_ref(x, w1, w2)
    assert out.shape == (B, C, H, W)
    assert jnp.allclose(out, ref, atol=1e-4, rtol=1e-4), "mismatch vs reference"

    print("KERNEL_OK")
</pallas_src>

<mosaic_0001>
module attributes {stable_mosaic.version = 11 : i64} {
  func.func @_channel_attention_kernel(%arg0: i32, %arg1: memref<2x64x256xf32, #tpu.memory_space<vmem>>, %arg2: memref<4x64xf32, #tpu.memory_space<vmem>>, %arg3: memref<64x4xf32, #tpu.memory_space<vmem>>, %arg4: memref<2x64x256xf32, #tpu.memory_space<vmem>>) attributes {dimension_semantics = [#tpu.dimension_semantics<parallel>], iteration_bounds = array<i64: 1>, scalar_prefetch = 0 : i64, scratch_operands = 0 : i64, tpu.core_type = #tpu.core_type<tc>, window_params = [{transform_indices = @transform_0, window_bounds = array<i64: 2, 64, 256>}, {pipeline_mode = #tpu.pipeline_mode<synchronous>, transform_indices = @transform_1, window_bounds = array<i64: 4, 64>}, {pipeline_mode = #tpu.pipeline_mode<synchronous>, transform_indices = @transform_2, window_bounds = array<i64: 64, 4>}, {transform_indices = @transform_3, window_bounds = array<i64: 2, 64, 256>}]} {
    %c0 = arith.constant 0 : index
    %c0_0 = arith.constant 0 : index
    %c0_1 = arith.constant 0 : index
    %0 = vector.load %arg1[%c0, %c0_0, %c0_1] : memref<2x64x256xf32, #tpu.memory_space<vmem>>, vector<2x64x256xf32>
    %cst = arith.constant dense<0.000000e+00> : vector<2x64xf32>
    %1 = vector.multi_reduction <add>, %0, %cst [2] : vector<2x64x256xf32> to vector<2x64xf32>
    %cst_2 = arith.constant 3.906250e-03 : f32
    %2 = vector.broadcast %cst_2 : f32 to vector<2x64xf32>
    %3 = arith.mulf %1, %2 : vector<2x64xf32>
    %cst_3 = arith.constant dense<0xFF800000> : vector<2x64xf32>
    %4 = vector.multi_reduction <maximumf>, %0, %cst_3 [2] : vector<2x64x256xf32> to vector<2x64xf32>
    %5 = tpu.concatenate %3, %4 in 0 : vector<2x64xf32>, vector<2x64xf32> -> vector<4x64xf32>
    %c0_4 = arith.constant 0 : index
    %c0_5 = arith.constant 0 : index
    %6 = vector.load %arg2[%c0_4, %c0_5] : memref<4x64xf32, #tpu.memory_space<vmem>>, vector<4x64xf32>
    %c0_6 = arith.constant 0 : index
    %c0_7 = arith.constant 0 : index
    %7 = vector.load %arg3[%c0_6, %c0_7] : memref<64x4xf32, #tpu.memory_space<vmem>>, vector<64x4xf32>
    %cst_8 = arith.constant dense<0.000000e+00> : vector<4x4xf32>
    %8 = tpu.matmul %5, %6, %cst_8 {dimension_numbers = #tpu.dot_dimension_numbers<[1], [1], [0], [0], [0, 0, 1, 0], [], []>} : vector<4x64xf32>, vector<4x64xf32>, vector<4x4xf32> -> vector<4x4xf32>
    %cst_9 = arith.constant 0.000000e+00 : f32
    %9 = vector.broadcast %cst_9 : f32 to vector<4x4xf32>
    %10 = arith.maximumf %8, %9 : vector<4x4xf32>
    %cst_10 = arith.constant dense<0.000000e+00> : vector<4x64xf32>
    %11 = tpu.matmul %10, %7, %cst_10 {dimension_numbers = #tpu.dot_dimension_numbers<[1], [1], [0], [0], [0, 0, 1, 0], [], []>} : vector<4x4xf32>, vector<64x4xf32>, vector<4x64xf32> -> vector<4x64xf32>
    %12 = vector.extract_strided_slice %11 {offsets = [0, 0], sizes = [2, 64], strides = [1, 1]} : vector<4x64xf32> to vector<2x64xf32>
    %13 = vector.extract_strided_slice %11 {offsets = [2, 0], sizes = [2, 64], strides = [1, 1]} : vector<4x64xf32> to vector<2x64xf32>
    %14 = arith.addf %12, %13 : vector<2x64xf32>
    %15 = arith.negf %14 : vector<2x64xf32>
    %16 = math.exp %15 : vector<2x64xf32>
    %cst_11 = arith.constant 1.000000e+00 : f32
    %17 = vector.broadcast %cst_11 : f32 to vector<2x64xf32>
    %18 = arith.addf %17, %16 : vector<2x64xf32>
    %19 = arith.divf %17, %18 : vector<2x64xf32>
    %cst_12 = arith.constant 1.000000e+00 : f32
    %20 = vector.broadcast %cst_12 : f32 to vector<2x64xf32>
    %21 = arith.addf %19, %20 : vector<2x64xf32>
    %22 = vector.shape_cast %21 : vector<2x64xf32> to vector<2x64x1xf32>
    %23 = vector.broadcast %22 : vector<2x64x1xf32> to vector<2x64x256xf32>
    %24 = arith.mulf %0, %23 : vector<2x64x256xf32>
    %c0_13 = arith.constant 0 : index
    %c0_14 = arith.constant 0 : index
    %c0_15 = arith.constant 0 : index
    %25 = vector.load %arg4[%c0_13, %c0_14, %c0_15] : memref<2x64x256xf32, #tpu.memory_space<vmem>>, vector<2x64x256xf32>
    tpu.vector_store %arg4[%c0_13, %c0_14, %c0_15], %24 {strides = array<i32>} : memref<2x64x256xf32, #tpu.memory_space<vmem>>, vector<2x64x256xf32>,
    return
  }
  func.func @transform_0(%arg0: i32) -> (i32, i32, i32) {
    %c0_i32 = arith.constant 0 : i32
    %c0_i32_0 = arith.constant 0 : i32
    %c0_i32_1 = arith.constant 0 : i32
    return %arg0, %c0_i32, %c0_i32_0 : i32, i32, i32
  }
  func.func @transform_1(%arg0: i32) -> (i32, i32) {
    %c0_i32 = arith.constant 0 : i32
    %c0_i32_0 = arith.constant 0 : i32
    %c0_i32_1 = arith.constant 0 : i32
    return %c0_i32, %c0_i32_0 : i32, i32
  }
  func.func @transform_2(%arg0: i32) -> (i32, i32) {
    %c0_i32 = arith.constant 0 : i32
    %c0_i32_0 = arith.constant 0 : i32
    %c0_i32_1 = arith.constant 0 : i32
    return %c0_i32, %c0_i32_0 : i32, i32
  }
  func.func @transform_3(%arg0: i32) -> (i32, i32, i32) {
    %c0_i32 = arith.constant 0 : i32
    %c0_i32_0 = arith.constant 0 : i32
    %c0_i32_1 = arith.constant 0 : i32
    return %arg0, %c0_i32, %c0_i32_0 : i32, i32, i32
  }
}

</mosaic_0001>

<llo_original>
// kernel: tpu_custom_call.1
$region0: #{tpu_custom_call.1}
  #allocation0 [shape = 'u32[]', space=smem, size = 0x4, offset = 0x4, fixed_abs, tag = 'smem constant byte address 0x4 - core index']
  #allocation1 [shape = 'u32[72,128]{1,0:T(1,128)}', space=vmem, size = 0x9000, scoped, tag = 'internal scratch']
  %s0 = inlined_call_operand.hbm [shape: f32[2,64,256], index: 0, kind: input, shape index: {}]
  %s1 = inlined_call_operand.vmem [shape: f32[4,64], index: 1, kind: input, shape index: {}]
  %s2 = inlined_call_operand.vmem [shape: f32[64,4], index: 2, kind: input, shape index: {}]
  %s3 = inlined_call_operand.hbm [shape: f32[2,64,256], index: 3, kind: output, shape index: {}]
  %s4 = sld [smem:[#allocation0]]
  $region26: #{tpu_custom_call.1} parent=0
    _
  %s6 = ssub.s32 1, %s4
  %s7 = scalar_select 0, %s6, %s4
  $region1: #{tpu_custom_call.1} parent=0
    #allocation2 [shape = 'u8[131072]{0}', space=vmem, size = 0x20000, scoped, tag = 'input window, operand 0, single buffered']
    #allocation3 [shape = 's32[1]{0}', space=sflag, size = 0x4, scoped, tag = 'scoped memory for tpu_custom_call.1']
    #allocation4 [shape = 's32[1]{0}', space=sflag, size = 0x4, scoped, tag = 'scoped memory for tpu_custom_call.1']
    #allocation5 [shape = 'u8[131072]{0}', space=vmem, size = 0x20000, scoped, tag = 'output window, operand 0, single buffered']
    %8 = vsyncpa [#allocation3], 0
    %9 = vsyncpa [#allocation4], 0
    // Predicated region
    $region2: #{tpu_custom_call.1} parent=1 // pred_check
      _
    $region3: #{tpu_custom_call.1} parent=1 // pred_check_branch
      %11 = sbr.rel (0) target = $region5
    $region4: #{tpu_custom_call.1} parent=1 // pred_region
      %13 = vsyncadd [#allocation3], 0
      %s14 = sshll.u32 %s0, 4
      %s15 = int_to_ptr.hbm [resolvable:$true] %s14
      %s16 = sshll.u32 [#allocation2], 4
      %s17 = int_to_ptr.vmem [resolvable:$true] %s16
      %22 = dma.hbm_to_vmem [thread:$0]  %s15, 4096, %s17, [#allocation3], 256, 256, 16
    $region5: #{tpu_custom_call.1} parent=1 // pred_fallthru
      _
    // Predicated region
    $region6: #{tpu_custom_call.1} parent=1 // pred_check
      _
    $region7: #{tpu_custom_call.1} parent=1 // pred_check_branch
      %24 = sbr.rel (0) target = $region9
    $region8: #{tpu_custom_call.1} parent=1 // pred_region
      _
    $region9: #{tpu_custom_call.1} parent=1 // pred_fallthru
      _
    // Predicated region
    $region10: #{tpu_custom_call.1} parent=1 // pred_check
      _
    $region11: #{tpu_custom_call.1} parent=1 // pred_check_branch
      %26 = sbr.rel (0) target = $region13
    $region12: #{tpu_custom_call.1} parent=1 // pred_region
      _
    $region13: #{tpu_custom_call.1} parent=1 // pred_fallthru
      _
    // Predicated region
    $region14: #{tpu_custom_call.1} parent=1 // pred_check
      _
    $region15: #{tpu_custom_call.1} parent=1 // pred_check_branch
      %28 = sbr.rel (0) target = $region17
    $region16: #{tpu_custom_call.1} parent=1 // pred_region
      %30 = dma.done [#allocation3], 4096
    $region17: #{tpu_custom_call.1} parent=1 // pred_fallthru
      _
    %v31 = vld [vmem:[#allocation2] sm:$0xff]
    %v32 = vld [vmem:[#allocation2 + $0x8] sm:$0xff]
    %v33 = vld [vmem:[#allocation2 + $0x10] sm:$0xff]
    %v34 = vld [vmem:[#allocation2 + $0x18] sm:$0xff]
    %v35 = vld [vmem:[#allocation2 + $0x20] sm:$0xff]
    %v36 = vld [vmem:[#allocation2 + $0x28] sm:$0xff]
    %v37 = vld [vmem:[#allocation2 + $0x30] sm:$0xff]
    %v38 = vld [vmem:[#allocation2 + $0x38] sm:$0xff]
    %v39 = vld [vmem:[#allocation2 + $0x40] sm:$0xff]
    %v40 = vld [vmem:[#allocation2 + $0x48] sm:$0xff]
    %v41 = vld [vmem:[#allocation2 + $0x50] sm:$0xff]
    %v42 = vld [vmem:[#allocation2 + $0x58] sm:$0xff]
    %v43 = vld [vmem:[#allocation2 + $0x60] sm:$0xff]
    %v44 = vld [vmem:[#allocation2 + $0x68] sm:$0xff]
    %v45 = vld [vmem:[#allocation2 + $0x70] sm:$0xff]
    %v46 = vld [vmem:[#allocation2 + $0x78] sm:$0xff]
    %v47 = vld [vmem:[#allocation2 + $0x80] sm:$0xff]
    %v48 = vld [vmem:[#allocation2 + $0x88] sm:$0xff]
    %v49 = vld [vmem:[#allocation2 + $0x90] sm:$0xff]
    %v50 = vld [vmem:[#allocation2 + $0x98] sm:$0xff]
    %v51 = vld [vmem:[#allocation2 + $0xa0] sm:$0xff]
    %v52 = vld [vmem:[#allocation2 + $0xa8] sm:$0xff]
    %v53 = vld [vmem:[#allocation2 + $0xb0] sm:$0xff]
    %v54 = vld [vmem:[#allocation2 + $0xb8] sm:$0xff]
    %v55 = vld [vmem:[#allocation2 + $0xc0] sm:$0xff]
    %v56 = vld [vmem:[#allocation2 + $0xc8] sm:$0xff]
    %v57 = vld [vmem:[#allocation2 + $0xd0] sm:$0xff]
    %v58 = vld [vmem:[#allocation2 + $0xd8] sm:$0xff]
    %v59 = vld [vmem:[#allocation2 + $0xe0] sm:$0xff]
    %v60 = vld [vmem:[#allocation2 + $0xe8] sm:$0xff]
    %v61 = vld [vmem:[#allocation2 + $0xf0] sm:$0xff]
    %v62 = vld [vmem:[#allocation2 + $0xf8] sm:$0xff]
    %v63 = vadd.f32 %v31, %v32
    %64 = vadd.xlane.f32.xlu0 %v63
    %v65 = vpop.xlane.xlu0 %64
    %v66 = vadd.f32 %v33, %v34
    %67 = vadd.xlane.f32.xlu0 %v66
    %v68 = vpop.xlane.xlu0 %67
    %v69 = vadd.f32 %v35, %v36
    %70 = vadd.xlane.f32.xlu0 %v69
    %v71 = vpop.xlane.xlu0 %70
    %v72 = vadd.f32 %v37, %v38
    %73 = vadd.xlane.f32.xlu0 %v72
    %v74 = vpop.xlane.xlu0 %73
    %v75 = vadd.f32 %v39, %v40
    %76 = vadd.xlane.f32.xlu0 %v75
    %v77 = vpop.xlane.xlu0 %76
    %v78 = vadd.f32 %v41, %v42
    %79 = vadd.xlane.f32.xlu0 %v78
    %v80 = vpop.xlane.xlu0 %79
    %v81 = vadd.f32 %v43, %v44
    %82 = vadd.xlane.f32.xlu0 %v81
    %v83 = vpop.xlane.xlu0 %82
    %v84 = vadd.f32 %v45, %v46
    %85 = vadd.xlane.f32.xlu0 %v84
    %v86 = vpop.xlane.xlu0 %85
    %v87 = vadd.f32 %v47, %v48
    %88 = vadd.xlane.f32.xlu0 %v87
    %v89 = vpop.xlane.xlu0 %88
    %v90 = vadd.f32 %v49, %v50
    %91 = vadd.xlane.f32.xlu0 %v90
    %v92 = vpop.xlane.xlu0 %91
    %v93 = vadd.f32 %v51, %v52
    %94 = vadd.xlane.f32.xlu0 %v93
    %v95 = vpop.xlane.xlu0 %94
    %v96 = vadd.f32 %v53, %v54
    %97 = vadd.xlane.f32.xlu0 %v96
    %v98 = vpop.xlane.xlu0 %97
    %v99 = vadd.f32 %v55, %v56
    %100 = vadd.xlane.f32.xlu0 %v99
    %v101 = vpop.xlane.xlu0 %100
    %v102 = vadd.f32 %v57, %v58
    %103 = vadd.xlane.f32.xlu0 %v102
    %v104 = vpop.xlane.xlu0 %103
    %v105 = vadd.f32 %v59, %v60
    %106 = vadd.xlane.f32.xlu0 %v105
    %v107 = vpop.xlane.xlu0 %106
    %v108 = vadd.f32 %v61, %v62
    %109 = vadd.xlane.f32.xlu0 %v108
    %v110 = vpop.xlane.xlu0 %109
    %v111 = vmul.f32 %v65, 0.00390625
    %v112 = vmul.f32 %v68, 0.00390625
    %v113 = vmul.f32 %v71, 0.00390625
    %v114 = vmul.f32 %v74, 0.00390625
    %v115 = vmul.f32 %v77, 0.00390625
    %v116 = vmul.f32 %v80, 0.00390625
    %v117 = vmul.f32 %v83, 0.00390625
    %v118 = vmul.f32 %v86, 0.00390625
    %v119 = vmul.f32 %v89, 0.00390625
    %v120 = vmul.f32 %v92, 0.00390625
    %v121 = vmul.f32 %v95, 0.00390625
    %v122 = vmul.f32 %v98, 0.00390625
    %v123 = vmul.f32 %v101, 0.00390625
    %v124 = vmul.f32 %v104, 0.00390625
    %v125 = vmul.f32 %v107, 0.00390625
    %v126 = vmul.f32 %v110, 0.00390625
    %v127 = vmax.f32 %v31, %v32
    %128 = vmax.xlane.f32.xlu0 %v127
    %v129 = vpop.xlane.xlu0 %128
    %v130 = vmax.f32 %v33, %v34
    %131 = vmax.xlane.f32.xlu0 %v130
    %v132 = vpop.xlane.xlu0 %131
    %v133 = vmax.f32 %v35, %v36
    %134 = vmax.xlane.f32.xlu0 %v133
    %v135 = vpop.xlane.xlu0 %134
    %v136 = vmax.f32 %v37, %v38
    %137 = vmax.xlane.f32.xlu0 %v136
    %v138 = vpop.xlane.xlu0 %137
    %v139 = vmax.f32 %v39, %v40
    %140 = vmax.xlane.f32.xlu0 %v139
    %v141 = vpop.xlane.xlu0 %140
    %v142 = vmax.f32 %v41, %v42
    %143 = vmax.xlane.f32.xlu0 %v142
    %v144 = vpop.xlane.xlu0 %143
    %v145 = vmax.f32 %v43, %v44
    %146 = vmax.xlane.f32.xlu0 %v145
    %v147 = vpop.xlane.xlu0 %146
    %v148 = vmax.f32 %v45, %v46
    %149 = vmax.xlane.f32.xlu0 %v148
    %v150 = vpop.xlane.xlu0 %149
    %v151 = vmax.f32 %v47, %v48
    %152 = vmax.xlane.f32.xlu0 %v151
    %v153 = vpop.xlane.xlu0 %152
    %v154 = vmax.f32 %v49, %v50
    %155 = vmax.xlane.f32.xlu0 %v154
    %v156 = vpop.xlane.xlu0 %155
    %v157 = vmax.f32 %v51, %v52
    %158 = vmax.xlane.f32.xlu0 %v157
    %v159 = vpop.xlane.xlu0 %158
    %v160 = vmax.f32 %v53, %v54
    %161 = vmax.xlane.f32.xlu0 %v160
    %v162 = vpop.xlane.xlu0 %161
    %v163 = vmax.f32 %v55, %v56
    %164 = vmax.xlane.f32.xlu0 %v163
    %v165 = vpop.xlane.xlu0 %164
    %v166 = vmax.f32 %v57, %v58
    %167 = vmax.xlane.f32.xlu0 %v166
    %v168 = vpop.xlane.xlu0 %167
    %v169 = vmax.f32 %v59, %v60
    %170 = vmax.xlane.f32.xlu0 %v169
    %v171 = vpop.xlane.xlu0 %170
    %v172 = vmax.f32 %v61, %v62
    %173 = vmax.xlane.f32.xlu0 %v172
    %v174 = vpop.xlane.xlu0 %173
    %v191 = vlaneseq
    %v192 = vand.u32 %v191, 127
    %v193 = vperm.slane %v111, %v192
    %v194 = vadd.s32 %v192, 4294967288
    %v195 = vperm.slane %v112, %v194
    %vm196 = vcmask 130112
    %v197 = vsel %vm196, %v195, %v193
    %v198 = vadd.s32 %v192, 4294967280
    %v199 = vperm.slane %v113, %v198
    %vm200 = vcmask 195712
    %v201 = vsel %vm200, %v199, %v197
    %v202 = vadd.s32 %v192, 4294967272
    %v203 = vperm.slane %v114, %v202
    %vm204 = vcmask 261312
    %v205 = vsel %vm204, %v203, %v201
    %v206 = vadd.s32 %v192, 4294967264
    %v207 = vperm.slane %v115, %v206
    %vm208 = vcmask 326912
    %v209 = vsel %vm208, %v207, %v205
    %v210 = vadd.s32 %v192, 4294967256
    %v211 = vperm.slane %v116, %v210
    %vm212 = vcmask 392512
    %v213 = vsel %vm212, %v211, %v209
    %v214 = vadd.s32 %v192, 4294967248
    %v215 = vperm.slane %v117, %v214
    %vm216 = vcmask 458112
    %v217 = vsel %vm216, %v215, %v213
    %v218 = vadd.s32 %v192, 4294967240
    %v219 = vperm.slane %v118, %v218
    %vm220 = vcmask 523712
    %v221 = vsel %vm220, %v219, %v217
    %v222 = vperm.slane %v119, %v192
    %v223 = vperm.slane %v120, %v194
    %v224 = vsel %vm196, %v223, %v222
    %v225 = vperm.slane %v121, %v198
    %v226 = vsel %vm200, %v225, %v224
    %v227 = vperm.slane %v122, %v202
    %v228 = vsel %vm204, %v227, %v226
    %v229 = vperm.slane %v123, %v206
    %v230 = vsel %vm208, %v229, %v228
    %v231 = vperm.slane %v124, %v210
    %v232 = vsel %vm212, %v231, %v230
    %v233 = vperm.slane %v125, %v214
    %v234 = vsel %vm216, %v233, %v232
    %v235 = vperm.slane %v126, %v218
    %v236 = vsel %vm220, %v235, %v234
    %vm237 = vcmask 1041409
    %v238 = vsel %vm237, %v236, %v221
    %v256 = vperm.slane %v129, %v192
    %v257 = vperm.slane %v132, %v194
    %v258 = vsel %vm196, %v257, %v256
    %v259 = vperm.slane %v135, %v198
    %v260 = vsel %vm200, %v259, %v258
    %v261 = vperm.slane %v138, %v202
    %v262 = vsel %vm204, %v261, %v260
    %v263 = vperm.slane %v141, %v206
    %v264 = vsel %vm208, %v263, %v262
    %v265 = vperm.slane %v144, %v210
    %v266 = vsel %vm212, %v265, %v264
    %v267 = vperm.slane %v147, %v214
    %v268 = vsel %vm216, %v267, %v266
    %v269 = vperm.slane %v150, %v218
    %v270 = vsel %vm220, %v269, %v268
    %v271 = vperm.slane %v153, %v192
    %v272 = vperm.slane %v156, %v194
    %v273 = vsel %vm196, %v272, %v271
    %v274 = vperm.slane %v159, %v198
    %v275 = vsel %vm200, %v274, %v273
    %v276 = vperm.slane %v162, %v202
    %v277 = vsel %vm204, %v276, %v275
    %v278 = vperm.slane %v165, %v206
    %v279 = vsel %vm208, %v278, %v277
    %v280 = vperm.slane %v168, %v210
    %v281 = vsel %vm212, %v280, %v279
    %v282 = vperm.slane %v171, %v214
    %v283 = vsel %vm216, %v282, %v281
    %v284 = vperm.slane %v174, %v218
    %v285 = vsel %vm220, %v284, %v283
    %vm286 = vcmask 1043459
    %v287 = vsel %vm286, %v285, %v270
    %vm289 = vcmask 1041408
    %v290 = vsel %vm289, %v238, %v287
    %v291 = vld [vmem:[%s1] sm:$0xf]
    %v292 = vld [vmem:[%s2] sm:$0xff]
    %v293 = vld [vmem:[%s2 + $0x8] sm:$0xff]
    %v294 = vld [vmem:[%s2 + $0x10] sm:$0xff]
    %v295 = vld [vmem:[%s2 + $0x18] sm:$0xff]
    %v296 = vld [vmem:[%s2 + $0x20] sm:$0xff]
    %v297 = vld [vmem:[%s2 + $0x28] sm:$0xff]
    %v298 = vld [vmem:[%s2 + $0x30] sm:$0xff]
    %v299 = vld [vmem:[%s2 + $0x38] sm:$0xff]
    %vm300 = vcmask 523264
    %v302 = vsel %vm300, %v290, 0
    %v305 = vsel %vm300, %v291, 0
    %307 = vmatpush.xpose.msra.mxu0 0.0
    %308 = vmatpush.xpose.msra.mxu0 0.0
    %309 = vmatpush.xpose.msra.mxu0 0.0
    %310 = vmatpush.xpose.msra.mxu0 0.0
    %311 = vmatpush.xpose.msra.mxu0 0.0
    %312 = vmatpush.xpose.msra.mxu0 0.0
    %313 = vmatpush.xpose.msra.mxu0 0.0
    %314 = vmatpush.xpose.msra.mxu0 0.0
    %315 = vmatpush.xpose.msra.mxu0 0.0
    %316 = vmatpush.xpose.msra.mxu0 0.0
    %317 = vmatpush.xpose.msra.mxu0 0.0
    %318 = vmatpush.xpose.msra.mxu0 0.0
    %319 = vmatpush.xpose.msra.mxu0 0.0
    %320 = vmatpush.xpose.msra.mxu0 0.0
    %321 = vmatpush.xpose.msra.mxu0 0.0
    %322 = vmatpush.xpose.msra.mxu0 %v305
    %323 = vmatmul.f32.gmra.mxu0 %v302
    %v324 = vpop.f32.mrf.mxu0
    %v325 = vadd.f32 0.0, %v324
    %326 = vdwg.mxu0
    %v327 = vmax.f32 %v325, 0.0
    %vm328 = vcmask 31744
    %v330 = vsel %vm328, %v327, 0
    %v333 = vsel %vm328, %v292, 0
    %v336 = vsel %vm328, %v293, 0
    %v339 = vsel %vm328, %v294, 0
    %v342 = vsel %vm328, %v295, 0
    %v345 = vsel %vm328, %v296, 0
    %v348 = vsel %vm328, %v297, 0
    %v351 = vsel %vm328, %v298, 0
    %v354 = vsel %vm328, %v299, 0
    %356 = vmatpush.xpose.msra.mxu0 0.0
    %357 = vmatpush.xpose.msra.mxu0 0.0
    %358 = vmatpush.xpose.msra.mxu0 0.0
    %359 = vmatpush.xpose.msra.mxu0 0.0
    %360 = vmatpush.xpose.msra.mxu0 0.0
    %361 = vmatpush.xpose.msra.mxu0 0.0
    %362 = vmatpush.xpose.msra.mxu0 0.0
    %363 = vmatpush.xpose.msra.mxu0 0.0
    %364 = vmatpush.xpose.msra.mxu0 %v354
    %365 = vmatpush.xpose.msra.mxu0 %v351
    %366 = vmatpush.xpose.msra.mxu0 %v348
    %367 = vmatpush.xpose.msra.mxu0 %v345
    %368 = vmatpush.xpose.msra.mxu0 %v342
    %369 = vmatpush.xpose.msra.mxu0 %v339
    %370 = vmatpush.xpose.msra.mxu0 %v336
    %371 = vmatpush.xpose.msra.mxu0 %v333
    %372 = vmatmul.f32.gmra.mxu0 %v330
    %v373 = vpop.f32.mrf.mxu0
    %v374 = vadd.f32 0.0, %v373
    %375 = vdwg.mxu0
    %v377 = vrot.slane %v374, 2
    %v379 = vadd.f32 %v374, %v377
    %v380 = vxor.u32 %v379, 2147483648
    %v381 = vmul.f32 %v380, 1.442695
    %v382 = vpow.pop %v381
    %v383 = vadd.f32 %v382, 1.0
    %v384 = vrcp.pop %v383
    %v385 = vmul.f32 %v383, %v384
    %v386 = vsub.f32 1.0, %v385
    %v387 = vmul.f32 %v384, %v386
    %v388 = vadd.f32 %v384, %v387
    %vm389 = vweird.f32 %v383
    %vm390 = vweird.f32 %v384
    %vm391 = vmor %vm389, %vm390
    %v392 = vsel %vm391, %v384, %v388
    %v393 = vand.u32 2147483647, %v383
    %vm394 = vcmp.eq.f32.partialorder %v393, 8.507059e+37
    %v395 = vand.u32 %v383, 2147483648
    %v396 = vor.u32 1.1754944e-38, %v395
    %v397 = vsel %vm394, %v396, %v392
    %v398 = vmul.f32 1.0, %v397
    %v399 = vadd.f32 %v398, 1.0
    %v400 = vperm.slane %v399, 0
    %v401 = vlaneseq
    %v402 = vshrl.u32 %v401, 7
    %404 = vset.pattern.permute.xlu0 %v402
    %405 = vperm.xlu0 %404, %v400
    %v406 = vpop.permute.xlu0 %405
    %v407 = vlaneseq
    %v408 = vshrl.u32 %v407, 7
    %v409 = vadd.s32 %v408, 8
    %410 = vset.pattern.permute.xlu0 %v409
    %411 = vperm.xlu0 %410, %v400
    %v412 = vpop.permute.xlu0 %411
    %v413 = vlaneseq
    %v414 = vshrl.u32 %v413, 7
    %v415 = vadd.s32 %v414, 16
    %416 = vset.pattern.permute.xlu0 %v415
    %417 = vperm.xlu0 %416, %v400
    %v418 = vpop.permute.xlu0 %417
    %v419 = vlaneseq
    %v420 = vshrl.u32 %v419, 7
    %v421 = vadd.s32 %v420, 24
    %422 = vset.pattern.permute.xlu0 %v421
    %423 = vperm.xlu0 %422, %v400
    %v424 = vpop.permute.xlu0 %423
    %v425 = vlaneseq
    %v426 = vshrl.u32 %v425, 7
    %v427 = vadd.s32 %v426, 32
    %428 = vset.pattern.permute.xlu0 %v427
    %429 = vperm.xlu0 %428, %v400
    %v430 = vpop.permute.xlu0 %429
    %v431 = vlaneseq
    %v432 = vshrl.u32 %v431, 7
    %v433 = vadd.s32 %v432, 40
    %434 = vset.pattern.permute.xlu0 %v433
    %435 = vperm.xlu0 %434, %v400
    %v436 = vpop.permute.xlu0 %435
    %v437 = vlaneseq
    %v438 = vshrl.u32 %v437, 7
    %v439 = vadd.s32 %v438, 48
    %440 = vset.pattern.permute.xlu0 %v439
    %441 = vperm.xlu0 %440, %v400
    %v442 = vpop.permute.xlu0 %441
    %v443 = vlaneseq
    %v444 = vshrl.u32 %v443, 7
    %v445 = vadd.s32 %v444, 56
    %446 = vset.pattern.permute.xlu0 %v445
    %447 = vperm.xlu0 %446, %v400
    %v448 = vpop.permute.xlu0 %447
    %v449 = vperm.slane %v399, 1
    %v450 = vlaneseq
    %v451 = vshrl.u32 %v450, 7
    %453 = vset.pattern.permute.xlu0 %v451
    %454 = vperm.xlu0 %453, %v449
    %v455 = vpop.permute.xlu0 %454
    %v456 = vlaneseq
    %v457 = vshrl.u32 %v456, 7
    %v458 = vadd.s32 %v457, 8
    %459 = vset.pattern.permute.xlu0 %v458
    %460 = vperm.xlu0 %459, %v449
    %v461 = vpop.permute.xlu0 %460
    %v462 = vlaneseq
    %v463 = vshrl.u32 %v462, 7
    %v464 = vadd.s32 %v463, 16
    %465 = vset.pattern.permute.xlu0 %v464
    %466 = vperm.xlu0 %465, %v449
    %v467 = vpop.permute.xlu0 %466
    %v468 = vlaneseq
    %v469 = vshrl.u32 %v468, 7
    %v470 = vadd.s32 %v469, 24
    %471 = vset.pattern.permute.xlu0 %v470
    %472 = vperm.xlu0 %471, %v449
    %v473 = vpop.permute.xlu0 %472
    %v474 = vlaneseq
    %v475 = vshrl.u32 %v474, 7
    %v476 = vadd.s32 %v475, 32
    %477 = vset.pattern.permute.xlu0 %v476
    %478 = vperm.xlu0 %477, %v449
    %v479 = vpop.permute.xlu0 %478
    %v480 = vlaneseq
    %v481 = vshrl.u32 %v480, 7
    %v482 = vadd.s32 %v481, 40
    %483 = vset.pattern.permute.xlu0 %v482
    %484 = vperm.xlu0 %483, %v449
    %v485 = vpop.permute.xlu0 %484
    %v486 = vlaneseq
    %v487 = vshrl.u32 %v486, 7
    %v488 = vadd.s32 %v487, 48
    %489 = vset.pattern.permute.xlu0 %v488
    %490 = vperm.xlu0 %489, %v449
    %v491 = vpop.permute.xlu0 %490
    %v492 = vlaneseq
    %v493 = vshrl.u32 %v492, 7
    %v494 = vadd.s32 %v493, 56
    %495 = vset.pattern.permute.xlu0 %v494
    %496 = vperm.xlu0 %495, %v449
    %v497 = vpop.permute.xlu0 %496
    %v498 = vmul.f32 %v31, %v406
    %v499 = vmul.f32 %v32, %v406
    %v500 = vmul.f32 %v33, %v412
    %v501 = vmul.f32 %v34, %v412
    %v502 = vmul.f32 %v35, %v418
    %v503 = vmul.f32 %v36, %v418
    %v504 = vmul.f32 %v37, %v424
    %v505 = vmul.f32 %v38, %v424
    %v506 = vmul.f32 %v39, %v430
    %v507 = vmul.f32 %v40, %v430
    %v508 = vmul.f32 %v41, %v436
    %v509 = vmul.f32 %v42, %v436
    %v510 = vmul.f32 %v43, %v442
    %v511 = vmul.f32 %v44, %v442
    %v512 = vmul.f32 %v45, %v448
    %v513 = vmul.f32 %v46, %v448
    %v514 = vmul.f32 %v47, %v455
    %v515 = vmul.f32 %v48, %v455
    %v516 = vmul.f32 %v49, %v461
    %v517 = vmul.f32 %v50, %v461
    %v518 = vmul.f32 %v51, %v467
    %v519 = vmul.f32 %v52, %v467
    %v520 = vmul.f32 %v53, %v473
    %v521 = vmul.f32 %v54, %v473
    %v522 = vmul.f32 %v55, %v479
    %v523 = vmul.f32 %v56, %v479
    %v524 = vmul.f32 %v57, %v485
    %v525 = vmul.f32 %v58, %v485
    %v526 = vmul.f32 %v59, %v491
    %v527 = vmul.f32 %v60, %v491
    %v528 = vmul.f32 %v61, %v497
    %v529 = vmul.f32 %v62, %v497
    %530 = vst [vmem:[#allocation5] sm:$0xff] %v498
    %531 = vst [vmem:[#allocation5 + $0x8] sm:$0xff] %v499
    %532 = vst [vmem:[#allocation5 + $0x10] sm:$0xff] %v500
    %533 = vst [vmem:[#allocation5 + $0x18] sm:$0xff] %v501
    %534 = vst [vmem:[#allocation5 + $0x20] sm:$0xff] %v502
    %535 = vst [vmem:[#allocation5 + $0x28] sm:$0xff] %v503
    %536 = vst [vmem:[#allocation5 + $0x30] sm:$0xff] %v504
    %537 = vst [vmem:[#allocation5 + $0x38] sm:$0xff] %v505
    %538 = vst [vmem:[#allocation5 + $0x40] sm:$0xff] %v506
    %539 = vst [vmem:[#allocation5 + $0x48] sm:$0xff] %v507
    %540 = vst [vmem:[#allocation5 + $0x50] sm:$0xff] %v508
    %541 = vst [vmem:[#allocation5 + $0x58] sm:$0xff] %v509
    %542 = vst [vmem:[#allocation5 + $0x60] sm:$0xff] %v510
    %543 = vst [vmem:[#allocation5 + $0x68] sm:$0xff] %v511
    %544 = vst [vmem:[#allocation5 + $0x70] sm:$0xff] %v512
    %545 = vst [vmem:[#allocation5 + $0x78] sm:$0xff] %v513
    %546 = vst [vmem:[#allocation5 + $0x80] sm:$0xff] %v514
    %547 = vst [vmem:[#allocation5 + $0x88] sm:$0xff] %v515
    %548 = vst [vmem:[#allocation5 + $0x90] sm:$0xff] %v516
    %549 = vst [vmem:[#allocation5 + $0x98] sm:$0xff] %v517
    %550 = vst [vmem:[#allocation5 + $0xa0] sm:$0xff] %v518
    %551 = vst [vmem:[#allocation5 + $0xa8] sm:$0xff] %v519
    %552 = vst [vmem:[#allocation5 + $0xb0] sm:$0xff] %v520
    %553 = vst [vmem:[#allocation5 + $0xb8] sm:$0xff] %v521
    %554 = vst [vmem:[#allocation5 + $0xc0] sm:$0xff] %v522
    %555 = vst [vmem:[#allocation5 + $0xc8] sm:$0xff] %v523
    %556 = vst [vmem:[#allocation5 + $0xd0] sm:$0xff] %v524
    %557 = vst [vmem:[#allocation5 + $0xd8] sm:$0xff] %v525
    %558 = vst [vmem:[#allocation5 + $0xe0] sm:$0xff] %v526
    %559 = vst [vmem:[#allocation5 + $0xe8] sm:$0xff] %v527
    %560 = vst [vmem:[#allocation5 + $0xf0] sm:$0xff] %v528
    %561 = vst [vmem:[#allocation5 + $0xf8] sm:$0xff] %v529
    // Predicated region
    $region18: #{tpu_custom_call.1} parent=1 // pred_check
      _
    $region19: #{tpu_custom_call.1} parent=1 // pred_check_branch
      %563 = sbr.rel (0) target = $region21
    $region20: #{tpu_custom_call.1} parent=1 // pred_region
      %565 = vsyncadd [#allocation4], 0
      %s566 = sshll.u32 [#allocation5], 4
      %s567 = int_to_ptr.vmem [resolvable:$true] %s566
      %s568 = sshll.u32 %s3, 4
      %s569 = int_to_ptr.hbm [resolvable:$true] %s568
      %574 = dma.vmem_to_hbm [thread:$0]  %s567, 4096, %s569, [#allocation4], 256, 256, 16
    $region21: #{tpu_custom_call.1} parent=1 // pred_fallthru
      _
    // Predicated region
    $region22: #{tpu_custom_call.1} parent=1 // pred_check
      _
    $region23: #{tpu_custom_call.1} parent=1 // pred_check_branch
      %576 = sbr.rel (0) target = $region25
    $region24: #{tpu_custom_call.1} parent=1 // pred_region
      %578 = dma.done [#allocation4], 4096
    $region25: #{tpu_custom_call.1} parent=1 // pred_fallthru
      _
    %579 = vsyncpa [#allocation3], 1
    %580 = vsyncpa [#allocation4], 1

</llo_original>
